<compile_context>
chip_gen: v7x
topology: tpu7x:2x2x1
jax: 0.10.0
libtpu: 0.0.40
codegen_flags: <defaults>
</compile_context>

<pallas_src>
import jax
import jax.numpy as jnp
from jax.experimental import pallas as pl
from jax.experimental.pallas import tpu as pltpu

C_OUT = 3
LANE = 128


def _conv1x1x1_kernel(w_ref, b_ref, x_ref, o_ref):
    # w_ref, b_ref: SMEM (C_OUT,) f32 scalars.
    # x_ref: VMEM (nb, tr, LANE) input tile (native dtype).
    # o_ref: VMEM (nb, C_OUT, tr, LANE) output tile (native dtype).
    x = x_ref[...].astype(jnp.float32)      # in-register cast; hidden under DMA
    for c in range(C_OUT):                  # tiny static unroll over 3 channels
        o_ref[:, c, :, :] = (x * w_ref[c] + b_ref[c]).astype(o_ref.dtype)


def _choose_tiles(n, r, max_rows_per_tile):
    """Pick (batch-block nb, row-block tr).

    * Large spatial volumes: nb=1, tr=max_rows (multiple of 8).
    * Small spatial volumes: tr=r (full extent) and pack several samples per
      step so tiles stay lane/sublane dense and per-step overhead amortizes.
    * Ensure >= 2 grid programs whenever possible (v7x has 2 TensorCores).
    """
    max_rows = max(8, (max_rows_per_tile // 8) * 8)
    if r >= max_rows:
        nb, tr = 1, max_rows
    else:
        tr = r
        nb = min(n, max(1, max_rows // max(r, 1)))
    if pl.cdiv(n, nb) * pl.cdiv(r, tr) < 2:      # single program: try to split
        if nb > 1 and n >= 2:
            nb = pl.cdiv(n, 2)
        elif r >= 16:
            tr = max(8, ((r // 2) // 8) * 8)     # keep sublane-divisible
    return nb, tr


def first_conv(x_ncdhw, weight, bias, *, max_rows_per_tile=4096):
    """Conv3d(1, 3, (1,1,1)) forward: out[n,c] = w[c] * x[n,0] + b[c].

    x_ncdhw: (N, 1, D, H, W); weight: (3, 1, 1, 1, 1); bias: (3,).
    """
    n, c_in, d, h, w = x_ncdhw.shape
    assert c_in == 1
    s = d * h * w
    dtype = x_ncdhw.dtype
    itemsize = jnp.dtype(dtype).itemsize

    # Lane-dense re-chunking of the spatial volume: (rows, 128).  Only the
    # unavoidable lane pad (to a multiple of 128) is materialized; ragged
    # row-/batch-tile tails are handled by Pallas' partial-block masking.
    r = pl.cdiv(s, LANE)
    s_pad = r * LANE

    x_flat = x_ncdhw.reshape(n, s)
    if s_pad != s:
        x_flat = jnp.pad(x_flat, ((0, 0), (0, s_pad - s)))
    x3 = x_flat.reshape(n, r, LANE)

    w_flat = weight.reshape(C_OUT).astype(jnp.float32)
    b_flat = bias.reshape(C_OUT).astype(jnp.float32)

    nb, tr = _choose_tiles(n, r, max_rows_per_tile)
    grid = (pl.cdiv(n, nb), pl.cdiv(r, tr))

    cost = pl.CostEstimate(
        flops=2 * C_OUT * n * s,
        transcendentals=0,
        bytes_accessed=itemsize * n * s_pad * (1 + C_OUT),
    )

    # Per-step working set (input + 3x output), double-buffered by Pallas.
    step_bytes = (1 + C_OUT) * nb * tr * LANE * itemsize
    vmem_limit = int(min(48 * 1024 * 1024, max(32 * 1024 * 1024, 3 * step_bytes)))

    out4 = pl.pallas_call(
        _conv1x1x1_kernel,
        out_shape=jax.ShapeDtypeStruct((n, C_OUT, r, LANE), dtype),
        grid=grid,
        in_specs=[
            pl.BlockSpec(memory_space=pltpu.MemorySpace.SMEM),      # weight (3,)
            pl.BlockSpec(memory_space=pltpu.MemorySpace.SMEM),      # bias   (3,)
            pl.BlockSpec((nb, tr, LANE), lambda i, j: (i, j, 0)),   # x tile
        ],
        out_specs=pl.BlockSpec((nb, C_OUT, tr, LANE), lambda i, j: (i, 0, j, 0)),
        compiler_params=pltpu.CompilerParams(
            dimension_semantics=("parallel", "parallel"),
            vmem_limit_bytes=vmem_limit,
        ),
        cost_estimate=cost,
    )(w_flat, b_flat, x3)

    # (N, 3, r*128) -> drop lane padding (only if any) -> (N, 3, D, H, W).
    out = out4.reshape(n, C_OUT, s_pad)
    if s_pad != s:
        out = out[:, :, :s]
    return out.reshape(n, C_OUT, d, h, w)


if __name__ == "__main__":
    key = jax.random.PRNGKey(0)
    N, D, H, W = 2, 4, 8, 16
    x = jax.random.normal(key, (N, 1, D, H, W), dtype=jnp.float32)

    # Deterministic synthetic parameters (shapes match nn.Conv3d(1, 3, (1,1,1))).
    weight = jnp.array([0.5, -1.25, 2.0], dtype=jnp.float32).reshape(C_OUT, 1, 1, 1, 1)
    bias = jnp.array([0.1, 0.2, -0.3], dtype=jnp.float32)

    out = first_conv(x, weight, bias)
    jax.block_until_ready(out)

    # Reference check (plain JAX broadcast of the affine map).
    ref = x * weight.reshape(1, C_OUT, 1, 1, 1) + bias.reshape(1, C_OUT, 1, 1, 1)
    assert out.shape == (N, C_OUT, D, H, W)
    assert jnp.allclose(out, ref, atol=1e-5), "mismatch vs reference"

    print("KERNEL_OK")
</pallas_src>

<mosaic_0001>
module attributes {stable_mosaic.version = 11 : i64} {
  func.func @_conv1x1x1_kernel(%arg0: i32, %arg1: i32, %arg2: memref<3xf32, #tpu.memory_space<smem>>, %arg3: memref<3xf32, #tpu.memory_space<smem>>, %arg4: memref<1x4x128xf32, #tpu.memory_space<vmem>>, %arg5: memref<1x3x4x128xf32, #tpu.memory_space<vmem>>) attributes {dimension_semantics = [#tpu.dimension_semantics<parallel>, #tpu.dimension_semantics<parallel>], iteration_bounds = array<i64: 2, 1>, scalar_prefetch = 0 : i64, scratch_operands = 0 : i64, tpu.core_type = #tpu.core_type<tc>, window_params = [{transform_indices = @transform_0, window_bounds = array<i64: 3>}, {transform_indices = @transform_1, window_bounds = array<i64: 3>}, {transform_indices = @transform_2, window_bounds = array<i64: 1, 4, 128>}, {transform_indices = @transform_3, window_bounds = array<i64: 1, 3, 4, 128>}]} {
    %c0 = arith.constant 0 : index
    %c0_0 = arith.constant 0 : index
    %c0_1 = arith.constant 0 : index
    %0 = vector.load %arg4[%c0, %c0_0, %c0_1] : memref<1x4x128xf32, #tpu.memory_space<vmem>>, vector<1x4x128xf32>
    %c0_2 = arith.constant 0 : index
    %1 = memref.load %arg2[%c0_2] : memref<3xf32, #tpu.memory_space<smem>>
    %2 = vector.broadcast %1 : f32 to vector<1x4x128xf32>
    %3 = arith.mulf %0, %2 : vector<1x4x128xf32>
    %c0_3 = arith.constant 0 : index
    %4 = memref.load %arg3[%c0_3] : memref<3xf32, #tpu.memory_space<smem>>
    %5 = vector.broadcast %4 : f32 to vector<1x4x128xf32>
    %6 = arith.addf %3, %5 : vector<1x4x128xf32>
    %c0_4 = arith.constant 0 : index
    %c0_5 = arith.constant 0 : index
    %c0_6 = arith.constant 0 : index
    %c0_7 = arith.constant 0 : index
    %7 = vector.load %arg5[%c0_4, %c0_5, %c0_6, %c0_7] : memref<1x3x4x128xf32, #tpu.memory_space<vmem>>, vector<1x1x4x128xf32>
    %8 = vector.shape_cast %7 : vector<1x1x4x128xf32> to vector<1x4x128xf32>
    %9 = vector.shape_cast %6 : vector<1x4x128xf32> to vector<1x1x4x128xf32>
    tpu.vector_store %arg5[%c0_4, %c0_5, %c0_6, %c0_7], %9 {strides = array<i32>} : memref<1x3x4x128xf32, #tpu.memory_space<vmem>>, vector<1x1x4x128xf32>,
    %c1 = arith.constant 1 : index
    %10 = memref.load %arg2[%c1] : memref<3xf32, #tpu.memory_space<smem>>
    %11 = vector.broadcast %10 : f32 to vector<1x4x128xf32>
    %12 = arith.mulf %0, %11 : vector<1x4x128xf32>
    %c1_8 = arith.constant 1 : index
    %13 = memref.load %arg3[%c1_8] : memref<3xf32, #tpu.memory_space<smem>>
    %14 = vector.broadcast %13 : f32 to vector<1x4x128xf32>
    %15 = arith.addf %12, %14 : vector<1x4x128xf32>
    %c0_9 = arith.constant 0 : index
    %c1_10 = arith.constant 1 : index
    %c0_11 = arith.constant 0 : index
    %c0_12 = arith.constant 0 : index
    %16 = vector.load %arg5[%c0_9, %c1_10, %c0_11, %c0_12] : memref<1x3x4x128xf32, #tpu.memory_space<vmem>>, vector<1x1x4x128xf32>
    %17 = vector.shape_cast %16 : vector<1x1x4x128xf32> to vector<1x4x128xf32>
    %18 = vector.shape_cast %15 : vector<1x4x128xf32> to vector<1x1x4x128xf32>
    tpu.vector_store %arg5[%c0_9, %c1_10, %c0_11, %c0_12], %18 {strides = array<i32>} : memref<1x3x4x128xf32, #tpu.memory_space<vmem>>, vector<1x1x4x128xf32>,
    %c2 = arith.constant 2 : index
    %19 = memref.load %arg2[%c2] : memref<3xf32, #tpu.memory_space<smem>>
    %20 = vector.broadcast %19 : f32 to vector<1x4x128xf32>
    %21 = arith.mulf %0, %20 : vector<1x4x128xf32>
    %c2_13 = arith.constant 2 : index
    %22 = memref.load %arg3[%c2_13] : memref<3xf32, #tpu.memory_space<smem>>
    %23 = vector.broadcast %22 : f32 to vector<1x4x128xf32>
    %24 = arith.addf %21, %23 : vector<1x4x128xf32>
    %c0_14 = arith.constant 0 : index
    %c2_15 = arith.constant 2 : index
    %c0_16 = arith.constant 0 : index
    %c0_17 = arith.constant 0 : index
    %25 = vector.load %arg5[%c0_14, %c2_15, %c0_16, %c0_17] : memref<1x3x4x128xf32, #tpu.memory_space<vmem>>, vector<1x1x4x128xf32>
    %26 = vector.shape_cast %25 : vector<1x1x4x128xf32> to vector<1x4x128xf32>
    %27 = vector.shape_cast %24 : vector<1x4x128xf32> to vector<1x1x4x128xf32>
    tpu.vector_store %arg5[%c0_14, %c2_15, %c0_16, %c0_17], %27 {strides = array<i32>} : memref<1x3x4x128xf32, #tpu.memory_space<vmem>>, vector<1x1x4x128xf32>,
    return
  }
  func.func @transform_0(%arg0: i32, %arg1: i32) -> i32 {
    %c0_i32 = arith.constant 0 : i32
    %c0_i32_0 = arith.constant 0 : i32
    return %c0_i32 : i32
  }
  func.func @transform_1(%arg0: i32, %arg1: i32) -> i32 {
    %c0_i32 = arith.constant 0 : i32
    %c0_i32_0 = arith.constant 0 : i32
    return %c0_i32 : i32
  }
  func.func @transform_2(%arg0: i32, %arg1: i32) -> (i32, i32, i32) {
    %c0_i32 = arith.constant 0 : i32
    %c0_i32_0 = arith.constant 0 : i32
    return %arg0, %arg1, %c0_i32 : i32, i32, i32
  }
  func.func @transform_3(%arg0: i32, %arg1: i32) -> (i32, i32, i32, i32) {
    %c0_i32 = arith.constant 0 : i32
    %c0_i32_0 = arith.constant 0 : i32
    %c0_i32_1 = arith.constant 0 : i32
    return %arg0, %c0_i32, %arg1, %c0_i32_0 : i32, i32, i32, i32
  }
}

</mosaic_0001>

<llo_original>
// kernel: tpu_custom_call.1
$region0: #{tpu_custom_call.1}
  #allocation0 [shape = 'u32[]', space=smem, size = 0x4, offset = 0x4, fixed_abs, tag = 'smem constant byte address 0x4 - core index']
  #allocation1 [shape = 'u32[144,128]{1,0:T(1,128)}', space=vmem, size = 0x12000, scoped, tag = 'internal scratch']
  %s0 = inlined_call_operand.hbm [shape: f32[3], index: 0, kind: input, shape index: {}]
  %s1 = inlined_call_operand.vmem [shape: f32[3], index: 1, kind: input, shape index: {}]
  %s2 = inlined_call_operand.hbm [shape: f32[2,4,128], index: 2, kind: input, shape index: {}]
  %s3 = inlined_call_operand.hbm [shape: f32[2,3,4,128], index: 3, kind: output, shape index: {}]
  %s4 = sld [smem:[#allocation0]]
  $region57: #{tpu_custom_call.1} parent=0
    _
  %s6 = ssub.s32 1, %s4
  %s7 = scalar_select 0, %s6, %s4
  $region1: #{tpu_custom_call.1} parent=0
    #allocation2 [shape = 'u8[512]{0}', space=smem, size = 0x200, scoped, tag = 'input window, operand 0, single buffered']
    #allocation3 [shape = 's32[2]{0}', space=sflag, size = 0x8, scoped, tag = 'scoped memory for tpu_custom_call.1']
    #allocation4 [shape = 's32[2]{0}', space=sflag, size = 0x8, scoped, tag = 'scoped memory for tpu_custom_call.1']
    #allocation5 [shape = 's32[2]{0}', space=sflag, size = 0x8, scoped, tag = 'scoped memory for tpu_custom_call.1']
    #allocation6 [shape = 's32[2]{0}', space=sflag, size = 0x8, scoped, tag = 'scoped memory for tpu_custom_call.1']
    #allocation7 [shape = 'u8[512]{0}', space=smem, size = 0x200, scoped, tag = 'input window, operand 1, single buffered']
    #allocation8 [shape = 'u8[4096]{0}', space=vmem, size = 0x1000, scoped, tag = 'input window, operand 2']
    #allocation9 [shape = 'u8[12288]{0}', space=vmem, size = 0x3000, scoped, tag = 'output window, operand 0']
    %8 = vsyncpa [#allocation5], 0
    %9 = vsyncpa [#allocation6], 0
    %10 = vsyncpa [#allocation3], 0
    %s11 = scalar_lea.sflag [#allocation3], 1
    %12 = vsyncpa %s11, 0
    %13 = vsyncpa [#allocation4], 0
    %s14 = scalar_lea.sflag [#allocation4], 1
    %15 = vsyncpa %s14, 0
    loop: start=0, step=1, limit=4
    $region2: #{tpu_custom_call.1} parent=1 // loop_pre_header
      _
    $region3: #{tpu_custom_call.1} parent=1 // loop_header
      %s17 = sphi 0, %s21
      %p18 = scmp.ge.s32.totalorder %s17, 4
      %s24 = sphi 0, %s36
      %s25 = sphi 0, %s32
      %s26 = sphi 0, %s24
      %s27 = sphi 0, %s25
      %s28 = sphi 0, %s26
      %s29 = sphi 0, %s27
      %s37 = sphi 0, %s37
      %s39 = sphi 0, %s37
      %s40 = sphi 0, %s39
      %s54 = sphi 0, %s40
      %s58 = sphi 0, %s58
      %s60 = sphi 0, %s58
      %s61 = sphi 0, %s60
      %s75 = sphi 0, %s61
      %s83 = sphi 0, %s85
      %s86 = sphi 0, %s83
      %s87 = sphi 0, %s86
      %s103 = sphi 0, %s87
      %s111 = sphi 0, %s113
      %s114 = sphi 0, %s111
      %s115 = sphi 0, %s114
      %s131 = sphi 0, %s115
    $region4: #{tpu_custom_call.1} parent=1 // loop_header_branch
      %20 = sbr.rel (%p18) target = $region8
    $region5: #{tpu_custom_call.1} parent=1 // loop_body
      %s22 = ssub.s32 %s17, 1
      %s23 = ssub.s32 %s17, 2
      %s30 = sadd.s32 1, %s25
      %p31 = scmp.ge.s32.totalorder %s30, 1
      %s32 = scalar_select %p31, 0, %s30
      %s33 = sadd.s32 1, %s24
      %s34 = scalar_select %p31, %s33, %s24
      %p35 = scmp.ge.s32.totalorder %s34, 2
      %s36 = scalar_select %p35, 0, %s34
      %s38 = sadd.s32 %s37, 1
      %p41 = scmp.eq.s32.totalorder %s17, 1
      %p42 = scmp.ne.s32.totalorder %s37, %s39
      %p43 = scmp.eq.s32.totalorder %s17, 0
      %p44 = por %p42, %p43
      %p45 = scmp.ne.s32.totalorder %s37, %s39
      %p46 = scmp.eq.s32.totalorder %s22, 1
      %p47 = por %p45, %p46
      %p48 = scmp.ne.s32.totalorder %s39, %s40
      %p49 = scmp.eq.s32.totalorder %s22, 0
      %p50 = por %p48, %p49
      %p51 = scmp.ne.s32.totalorder %s39, %s40
      %p52 = scmp.eq.s32.totalorder %s23, 1
      %p53 = por %p51, %p52
      %p55 = scmp.ne.s32.totalorder %s40, %s54
      %p56 = scmp.eq.s32.totalorder %s23, 0
      %p57 = por %p55, %p56
      %s59 = sadd.s32 %s58, 1
      %p62 = scmp.eq.s32.totalorder %s17, 1
      %p63 = scmp.ne.s32.totalorder %s58, %s60
      %p64 = scmp.eq.s32.totalorder %s17, 0
      %p65 = por %p63, %p64
      %p66 = scmp.ne.s32.totalorder %s58, %s60
      %p67 = scmp.eq.s32.totalorder %s22, 1
      %p68 = por %p66, %p67
      %p69 = scmp.ne.s32.totalorder %s60, %s61
      %p70 = scmp.eq.s32.totalorder %s22, 0
      %p71 = por %p69, %p70
      %p72 = scmp.ne.s32.totalorder %s60, %s61
      %p73 = scmp.eq.s32.totalorder %s23, 1
      %p74 = por %p72, %p73
      %p76 = scmp.ne.s32.totalorder %s61, %s75
      %p77 = scmp.eq.s32.totalorder %s23, 0
      %p78 = por %p76, %p77
      %s79 = ssub.s32 %s24, %s36
      %s80 = ssub.s32 %s25, %s32
      %s81 = sor.u32 %s79, %s80
      %p82 = scmp.eq.s32.totalorder %s81, 0
      %s84 = sadd.s32 %s83, 1
      %s85 = scalar_select %p82, %s83, %s84
      %p88 = pneg %p82
      %p89 = scmp.eq.s32.totalorder %s17, 1
      %p90 = por %p88, %p89
      %p91 = scmp.ne.s32.totalorder %s83, %s86
      %p92 = scmp.eq.s32.totalorder %s17, 0
      %p93 = por %p91, %p92
      %p94 = scmp.ne.s32.totalorder %s83, %s86
      %p95 = scmp.eq.s32.totalorder %s22, 1
      %p96 = por %p94, %p95
      %p97 = scmp.ne.s32.totalorder %s86, %s87
      %p98 = scmp.eq.s32.totalorder %s22, 0
      %p99 = por %p97, %p98
      %p100 = scmp.ne.s32.totalorder %s86, %s87
      %p101 = scmp.eq.s32.totalorder %s23, 1
      %p102 = por %p100, %p101
      %p104 = scmp.ne.s32.totalorder %s87, %s103
      %p105 = scmp.eq.s32.totalorder %s23, 0
      %p106 = por %p104, %p105
      %s107 = ssub.s32 %s24, %s36
      %s108 = ssub.s32 %s25, %s32
      %s109 = sor.u32 %s107, %s108
      %p110 = scmp.eq.s32.totalorder %s109, 0
      %s112 = sadd.s32 %s111, 1
      %s113 = scalar_select %p110, %s111, %s112
      %p116 = pneg %p110
      %p117 = scmp.eq.s32.totalorder %s17, 1
      %p118 = por %p116, %p117
      %p119 = scmp.ne.s32.totalorder %s111, %s114
      %p120 = scmp.eq.s32.totalorder %s17, 0
      %p121 = por %p119, %p120
      %p122 = scmp.ne.s32.totalorder %s111, %s114
      %p123 = scmp.eq.s32.totalorder %s22, 1
      %p124 = por %p122, %p123
      %p125 = scmp.ne.s32.totalorder %s114, %s115
      %p126 = scmp.eq.s32.totalorder %s22, 0
      %p127 = por %p125, %p126
      %p128 = scmp.ne.s32.totalorder %s114, %s115
      %p129 = scmp.eq.s32.totalorder %s23, 1
      %p130 = por %p128, %p129
      %p132 = scmp.ne.s32.totalorder %s115, %s131
      %p133 = scmp.eq.s32.totalorder %s23, 0
      %p134 = por %p132, %p133
      %p135 = scmp.le.s32.totalorder 1, %s17
      %p136 = scmp.lt.s32.totalorder %s17, 3
      %p137 = pnand %p135, %p136
      %p138 = pneg %p137
      // Predicated region
      $region9: #{tpu_custom_call.1} parent=5 // pred_check
        _
      $region10: #{tpu_custom_call.1} parent=5 // pred_check_branch
        %140 = sbr.rel (%p137) target = $region12
      $region11: #{tpu_custom_call.1} parent=5 // pred_region
        %s141 = ssub.s32 %s17, 1
        // Predicated region
        $region13: #{tpu_custom_call.1} parent=11 // pred_check
          %p142 = pneg %p50
        $region14: #{tpu_custom_call.1} parent=11 // pred_check_branch
          %144 = sbr.rel (%p142) target = $region16
        $region15: #{tpu_custom_call.1} parent=11 // pred_region
          %s146 = ssub.s32 16, 16
          %147 = vsyncadd [#allocation5], %s146
          %150 = dma.hbm_to_smem %s0, 16, [#allocation2], [#allocation5]
        $region16: #{tpu_custom_call.1} parent=11 // pred_fallthru
          _
        // Predicated region
        $region17: #{tpu_custom_call.1} parent=11 // pred_check
          %p151 = pneg %p71
        $region18: #{tpu_custom_call.1} parent=11 // pred_check_branch
          %153 = sbr.rel (%p151) target = $region20
        $region19: #{tpu_custom_call.1} parent=11 // pred_region
          %s155 = ssub.s32 16, 16
          %156 = vsyncadd [#allocation6], %s155
          %s158 = sshll.u32 %s1, 4
          %s159 = int_to_ptr.vmem [resolvable:$true] %s158
          %161 = dma.vmem_to_smem %s159, 16, [#allocation7], [#allocation6]
        $region20: #{tpu_custom_call.1} parent=11 // pred_fallthru
          _
      $region12: #{tpu_custom_call.1} parent=5 // pred_fallthru
        _
      %p162 = scmp.lt.s32.totalorder %s17, 2
      // Predicated region
      $region21: #{tpu_custom_call.1} parent=5 // pred_check
        %p163 = pneg %p162
      $region22: #{tpu_custom_call.1} parent=5 // pred_check_branch
        %165 = sbr.rel (%p163) target = $region24
      $region23: #{tpu_custom_call.1} parent=5 // pred_region
        // Predicated region
        $region25: #{tpu_custom_call.1} parent=23 // pred_check
          %p166 = pneg %p93
        $region26: #{tpu_custom_call.1} parent=23 // pred_check_branch
          %168 = sbr.rel (%p166) target = $region28
        $region27: #{tpu_custom_call.1} parent=23 // pred_region
          %s169 = sand.u32 %s83, 1
          %s170 = scalar_lea.sflag [#allocation3], %s169
          %s171 = sand.u32 %s83, 1
          %s172 = smul.addr %s171, 4
          %s173 = scalar_lea.vmem [#allocation8], %s172
          %s175 = ssub.s32 64, 64
          %176 = vsyncadd %s170, %s175
          %s177 = sadd.s32 %s25, %s24
          %s178 = smul.addr %s177, 64
          %s179 = scalar_lea.hbm %s2, %s178
          %s181 = sshll.u32 %s173, 4
          %s182 = int_to_ptr.vmem [resolvable:$true] %s181
          %184 = dma.hbm_to_vmem [thread:$0]  %s179, 64, %s182, %s170
        $region28: #{tpu_custom_call.1} parent=23 // pred_fallthru
          _
      $region24: #{tpu_custom_call.1} parent=5 // pred_fallthru
        _
      %p185 = scmp.le.s32.totalorder 1, %s17
      %p186 = scmp.lt.s32.totalorder %s17, 3
      %p187 = pnand %p185, %p186
      %p188 = pneg %p187
      // Predicated region
      $region29: #{tpu_custom_call.1} parent=5 // pred_check
        _
      $region30: #{tpu_custom_call.1} parent=5 // pred_check_branch
        %190 = sbr.rel (%p187) target = $region32
      $region31: #{tpu_custom_call.1} parent=5 // pred_region
        %s191 = ssub.s32 %s17, 1
        // Predicated region
        $region33: #{tpu_custom_call.1} parent=31 // pred_check
          %p192 = pneg %p50
        $region34: #{tpu_custom_call.1} parent=31 // pred_check_branch
          %194 = sbr.rel (%p192) target = $region36
        $region35: #{tpu_custom_call.1} parent=31 // pred_region
          %195 = dma.done [#allocation5], 16
        $region36: #{tpu_custom_call.1} parent=31 // pred_fallthru
          _
        // Predicated region
        $region37: #{tpu_custom_call.1} parent=31 // pred_check
          %p196 = pneg %p71
        $region38: #{tpu_custom_call.1} parent=31 // pred_check_branch
          %198 = sbr.rel (%p196) target = $region40
        $region39: #{tpu_custom_call.1} parent=31 // pred_region
          %199 = dma.done [#allocation6], 16
        $region40: #{tpu_custom_call.1} parent=31 // pred_fallthru
          _
        %s200 = sand.u32 %s86, 1
        %s201 = scalar_lea.sflag [#allocation3], %s200
        %s202 = sand.u32 %s86, 1
        %s203 = smul.addr %s202, 4
        %s204 = scalar_lea.vmem [#allocation8], %s203
        // Predicated region
        $region41: #{tpu_custom_call.1} parent=31 // pred_check
          %p205 = pneg %p99
        $region42: #{tpu_custom_call.1} parent=31 // pred_check_branch
          %207 = sbr.rel (%p205) target = $region44
        $region43: #{tpu_custom_call.1} parent=31 // pred_region
          %208 = dma.done %s201, 64
        $region44: #{tpu_custom_call.1} parent=31 // pred_fallthru
          _
        %209 = sfence
        %p210 = pneg %p50
        %p211 = pneg %p47
        %p212 = pneg %p71
        %p213 = pneg %p68
        %s214 = sand.u32 %s86, 1
        %s215 = scalar_lea.sflag [#allocation3], %s214
        %s216 = sand.u32 %s86, 1
        %s217 = smul.addr %s216, 4
        %s218 = scalar_lea.vmem [#allocation8], %s217
        %p219 = pneg %p99
        %p220 = pneg %p96
        %p221 = pneg %p127
        %p222 = pneg %p124
        %s223 = sand.u32 %s114, 1
        %s224 = scalar_lea.sflag [#allocation4], %s223
        %s225 = sand.u32 %s114, 1
        %s226 = smul.addr %s225, 12
        %s227 = scalar_lea.vmem [#allocation9], %s226
        %v228 = vld [vmem:[%s204] sm:$0xf]
        %s229 = sld [smem:[#allocation2]]
        %v230 = vstv %s229
        %v231 = vmul.f32 %v228, %v230
        %s232 = sld [smem:[#allocation7]]
        %v233 = vstv %s232
        %v234 = vadd.f32 %v231, %v233
        %235 = vst [vmem:[%s227] sm:$0xf] %v234
        %s236 = sld [smem:[#allocation2 + $0x1]]
        %v237 = vstv %s236
        %v238 = vmul.f32 %v228, %v237
        %s239 = sld [smem:[#allocation7 + $0x1]]
        %v240 = vstv %s239
        %v241 = vadd.f32 %v238, %v240
        %s242 = scalar_lea.vmem %s227, 4 [#allocation9]
        %243 = vst [vmem:[%s242] sm:$0xf] %v241
        %s244 = sld [smem:[#allocation2 + $0x2]]
        %v245 = vstv %s244
        %v246 = vmul.f32 %v228, %v245
        %s247 = sld [smem:[#allocation7 + $0x2]]
        %v248 = vstv %s247
        %v249 = vadd.f32 %v246, %v248
        %s250 = scalar_lea.vmem %s227, 8 [#allocation9]
        %251 = vst [vmem:[%s250] sm:$0xf] %v249
        %s252 = sand.u32 %s114, 1
        %s253 = scalar_lea.sflag [#allocation4], %s252
        %s254 = sand.u32 %s114, 1
        %s255 = smul.addr %s254, 12
        %s256 = scalar_lea.vmem [#allocation9], %s255
        // Predicated region
        $region45: #{tpu_custom_call.1} parent=31 // pred_check
          %p257 = pneg %p124
        $region46: #{tpu_custom_call.1} parent=31 // pred_check_branch
          %259 = sbr.rel (%p257) target = $region48
        $region47: #{tpu_custom_call.1} parent=31 // pred_region
          %s261 = ssub.s32 192, 192
          %262 = vsyncadd %s253, %s261
          %s263 = smul.addr %s26, 3
          %s264 = sadd.s32 %s27, %s263
          %s265 = smul.addr %s264, 64
          %s266 = scalar_lea.hbm %s3, %s265
          %s267 = sshll.u32 %s256, 4
          %s268 = int_to_ptr.vmem [resolvable:$true] %s267
          %273 = dma.vmem_to_hbm [thread:$0]  %s268, 192, %s266, %s253, 64, 64, 4
        $region48: #{tpu_custom_call.1} parent=31 // pred_fallthru
          _
      $region32: #{tpu_custom_call.1} parent=5 // pred_fallthru
        _
      %p274 = scmp.le.s32.totalorder 2, %s17
      // Predicated region
      $region49: #{tpu_custom_call.1} parent=5 // pred_check
        %p275 = pneg %p274
      $region50: #{tpu_custom_call.1} parent=5 // pred_check_branch
        %277 = sbr.rel (%p275) target = $region52
      $region51: #{tpu_custom_call.1} parent=5 // pred_region
        %s278 = ssub.s32 %s17, 2
        // Predicated region
        $region53: #{tpu_custom_call.1} parent=51 // pred_check
          %p279 = pneg %p130
        $region54: #{tpu_custom_call.1} parent=51 // pred_check_branch
          %281 = sbr.rel (%p279) target = $region56
        $region55: #{tpu_custom_call.1} parent=51 // pred_region
          %s282 = sand.u32 %s115, 1
          %s283 = scalar_lea.sflag [#allocation4], %s282
          %s284 = sand.u32 %s115, 1
          %s285 = smul.addr %s284, 12
          %s286 = scalar_lea.vmem [#allocation9], %s285
          %287 = dma.done %s283, 192
        $region56: #{tpu_custom_call.1} parent=51 // pred_fallthru
          _
      $region52: #{tpu_custom_call.1} parent=5 // pred_fallthru
        _
    $region6: #{tpu_custom_call.1} parent=1 // loop_footer
      %s21 = sadd.s32 1, %s17
    $region7: #{tpu_custom_call.1} parent=1 // loop_footer_branch
      %16 = sbr.rel target = $region3
    $region8: #{tpu_custom_call.1} parent=1 // loop_exit
      _
    %288 = vsyncpa [#allocation3], 1
    %s289 = scalar_lea.sflag [#allocation3], 1
    %290 = vsyncpa %s289, 1
    %291 = vsyncpa [#allocation4], 1
    %s292 = scalar_lea.sflag [#allocation4], 1
    %293 = vsyncpa %s292, 1
    %294 = vsyncpa [#allocation5], 1
    %s295 = scalar_lea.sflag [#allocation5], 1
    %296 = vsyncpa %s295, 1
    %297 = vsyncpa [#allocation6], 1
    %s298 = scalar_lea.sflag [#allocation6], 1
    %299 = vsyncpa %s298, 1

</llo_original>
